<compile_context>
chip_gen: v5e
topology: v5e:2x2
jax: 0.10.0
libtpu: 0.0.40
codegen_flags: <defaults>
</compile_context>

<pallas_src>
import jax
import jax.numpy as jnp
import numpy as np
from jax import lax
from jax.experimental import pallas as pl
from jax.experimental.pallas import tpu as pltpu


def _round_up(x, m):
    return ((x + m - 1) // m) * m


def _vmem_budget_bytes():
    """~80% of this generation's physical VMEM (v5e/v6e ~102 MiB, v7x ~51 MiB)."""
    cap = 64 * 1024 * 1024
    try:
        cap = int(getattr(pltpu.get_tpu_info(), "vmem_capacity_bytes", cap))
    except Exception:
        pass
    return max(32 * 1024 * 1024, int(cap * 0.8))


# --------------------------------------------------------------------------
# Kernels
# --------------------------------------------------------------------------
def _make_resident_kernel(n_k, tk):
    """Weight-resident kernel: weights live in VMEM for the whole call."""

    def kernel(x_ref, w1_ref, b1_ref, w2_ref, b2_ref, o_ref, acc_ref):
        x = x_ref[...]                                   # (tm, d_model) compute dtype
        b2 = b2_ref[...]                                 # (1, d_model)  f32

        if n_k == 1:
            # Whole d_ff in one shot; no accumulator needed.
            h = jnp.dot(x, w1_ref[...], preferred_element_type=jnp.float32)
            h = jnp.maximum(h + b1_ref[...], 0.0)
            y = jnp.dot(h.astype(w2_ref.dtype), w2_ref[...],
                        preferred_element_type=jnp.float32)
            o_ref[...] = (y + b2).astype(o_ref.dtype)
            return

        # Slice 0 peeled: seed the accumulator directly (no zero fill, no
        # first read-modify-write, b2 folded in here).
        h0 = jnp.dot(x, w1_ref[:, pl.ds(0, tk)], preferred_element_type=jnp.float32)
        h0 = jnp.maximum(h0 + b1_ref[:, pl.ds(0, tk)], 0.0)
        acc_ref[...] = jnp.broadcast_to(b2, acc_ref.shape) + jnp.dot(
            h0.astype(w2_ref.dtype), w2_ref[pl.ds(0, tk), :],
            preferred_element_type=jnp.float32)

        def body(k, carry):
            off = pl.multiple_of(k * tk, tk)
            hk = jnp.dot(x, w1_ref[:, pl.ds(off, tk)],
                         preferred_element_type=jnp.float32)
            hk = jnp.maximum(hk + b1_ref[:, pl.ds(off, tk)], 0.0)
            acc_ref[...] += jnp.dot(hk.astype(w2_ref.dtype),
                                    w2_ref[pl.ds(off, tk), :],
                                    preferred_element_type=jnp.float32)
            return carry

        lax.fori_loop(1, n_k, body, 0)
        o_ref[...] = acc_ref[...].astype(o_ref.dtype)

    return kernel


def _streaming_kernel(x_ref, w1_ref, b1_ref, w2_ref, b2_ref, o_ref, acc_ref):
    """Fallback: weights streamed per (row tile, d_ff slice) grid step."""
    k = pl.program_id(1)

    h = jnp.dot(x_ref[...], w1_ref[...], preferred_element_type=jnp.float32)
    h = jnp.maximum(h + b1_ref[...], 0.0)                       # (tm, tk_ff) f32
    contrib = jnp.dot(h.astype(w2_ref.dtype), w2_ref[...],
                      preferred_element_type=jnp.float32)       # (tm, d_model) f32

    @pl.when(k == 0)
    def _():
        acc_ref[...] = contrib + b2_ref[...]        # seed: no zero fill, b2 folded in

    @pl.when(k > 0)
    def _():
        acc_ref[...] += contrib

    @pl.when(k == pl.num_programs(1) - 1)
    def _():
        o_ref[...] = acc_ref[...].astype(o_ref.dtype)


# --------------------------------------------------------------------------
# Wrapper
# --------------------------------------------------------------------------
def position_wise_ffn(x, w1, b1, w2, b2, *, tm=512, tk_ff=1024,
                      compute_dtype=None, force_streaming=False):
    """x: (batch, seq, d_model).  w1: (d_model, d_ff), w2: (d_ff, d_model).

    Weights are stored pre-transposed as (in_features, out_features), matching
    PyTorch nn.Linear applied to the last dim of x.  When x is f32 the MXU
    operands are cast to bf16 (accumulation, bias add and ReLU stay in f32);
    the output is cast back to x.dtype.
    """
    assert tm % 256 == 0 and tk_ff % 128 == 0
    out_dtype = x.dtype
    batch, seq, d_model = x.shape
    d_ff = w1.shape[1]
    M = batch * seq

    if compute_dtype is None:
        compute_dtype = jnp.bfloat16 if x.dtype == jnp.float32 else x.dtype
    c_item = jnp.dtype(compute_dtype).itemsize
    o_item = jnp.dtype(out_dtype).itemsize

    w1 = w1.astype(compute_dtype)
    w2 = w2.astype(compute_dtype)
    b1 = b1.astype(jnp.float32)
    b2 = b2.astype(jnp.float32)

    # --- row tiling (pad M up; padded rows are sliced off at the end) ---
    if M <= 256:
        tm_eff = _round_up(M, 128)                   # one MXU-aligned row block
    else:
        # At least two row tiles so the 'parallel' axis can fill both v7x TCs.
        tm_eff = min(tm, _round_up((M + 1) // 2, 128))
    M_p = _round_up(M, tm_eff)

    x2d = x.reshape(M, d_model).astype(compute_dtype)
    if M_p != M:
        x2d = jnp.pad(x2d, ((0, M_p - M), (0, 0)))

    # --- d_ff tiling (zero-padded lanes contribute exactly 0) ---
    tk_eff = d_ff if d_ff <= tk_ff else tk_ff
    d_ff_p = _round_up(d_ff, tk_eff)
    if d_ff_p != d_ff:
        w1 = jnp.pad(w1, ((0, 0), (0, d_ff_p - d_ff)))
        b1 = jnp.pad(b1, ((0, d_ff_p - d_ff),))
        w2 = jnp.pad(w2, ((0, d_ff_p - d_ff), (0, 0)))
    n_k = d_ff_p // tk_eff

    b1_2d = b1.reshape(1, d_ff_p)
    b2_2d = b2.reshape(1, d_model)

    n_row_tiles = M_p // tm_eff
    budget = _vmem_budget_bytes()

    # VMEM estimate for the weight-resident path.  Constant index_maps mean
    # the weights are DMA'd only once, but the BlockSpec pipeline still
    # allocates double buffers for them, hence the factor 2.
    weight_bytes = (w1.size + w2.size) * c_item + (b1_2d.size + b2_2d.size) * 4
    per_tile_bytes = (2 * tm_eff * d_model * (c_item + o_item)   # x / out double-buffers
                      + tm_eff * d_model * 4                     # f32 accumulator scratch
                      + 2 * tm_eff * tk_eff * 4)                 # h intermediates headroom
    use_resident = (not force_streaming) and (2 * weight_bytes + per_tile_bytes <= budget)

    cost = pl.CostEstimate(
        flops=int(4 * M * d_model * d_ff),
        transcendentals=0,
        bytes_accessed=int(M_p * d_model * (c_item + o_item)
                           + (1 if use_resident else n_row_tiles)
                           * (w1.size + w2.size) * c_item
                           + (b1_2d.size + b2_2d.size) * 4),
    )

    if use_resident:
        grid_spec = pltpu.PrefetchScalarGridSpec(
            num_scalar_prefetch=0,
            grid=(n_row_tiles,),
            in_specs=[
                pl.BlockSpec((tm_eff, d_model), lambda i: (i, 0)),   # x rows
                pl.BlockSpec((d_model, d_ff_p), lambda i: (0, 0)),   # W1 (resident)
                pl.BlockSpec((1, d_ff_p), lambda i: (0, 0)),         # b1 (resident)
                pl.BlockSpec((d_ff_p, d_model), lambda i: (0, 0)),   # W2 (resident)
                pl.BlockSpec((1, d_model), lambda i: (0, 0)),        # b2
            ],
            out_specs=pl.BlockSpec((tm_eff, d_model), lambda i: (i, 0)),
            scratch_shapes=[pltpu.VMEM((tm_eff, d_model), jnp.float32)],
        )
        kernel = _make_resident_kernel(n_k, tk_eff)
        dims = ("parallel",)
    else:
        grid_spec = pltpu.PrefetchScalarGridSpec(
            num_scalar_prefetch=0,
            grid=(n_row_tiles, n_k),
            in_specs=[
                pl.BlockSpec((tm_eff, d_model), lambda i, k: (i, 0)),   # x rows
                pl.BlockSpec((d_model, tk_eff), lambda i, k: (0, k)),   # W1 slice
                pl.BlockSpec((1, tk_eff), lambda i, k: (0, k)),         # b1 slice
                pl.BlockSpec((tk_eff, d_model), lambda i, k: (k, 0)),   # W2 slice
                pl.BlockSpec((1, d_model), lambda i, k: (0, 0)),        # b2
            ],
            out_specs=pl.BlockSpec((tm_eff, d_model), lambda i, k: (i, 0)),
            scratch_shapes=[pltpu.VMEM((tm_eff, d_model), jnp.float32)],
        )
        kernel = _streaming_kernel
        dims = ("parallel", "arbitrary")

    out2d = pl.pallas_call(
        kernel,
        out_shape=jax.ShapeDtypeStruct((M_p, d_model), out_dtype),
        grid_spec=grid_spec,
        compiler_params=pltpu.CompilerParams(
            dimension_semantics=dims,
            vmem_limit_bytes=budget,
        ),
        cost_estimate=cost,
    )(x2d, w1, b1_2d, w2, b2_2d)

    if M_p != M:
        out2d = out2d[:M]
    return out2d.reshape(batch, seq, d_model)


# --------------------------------------------------------------------------
# References and test harness
# --------------------------------------------------------------------------
def _ref_ffn(x, w1, b1, w2, b2):
    return jnp.maximum(x @ w1 + b1, 0.0) @ w2 + b2


def _ref_ffn_cast(x, w1, b1, w2, b2, dtype):
    """Reference with the same operand-cast policy as the kernel (f32 accumulate)."""
    h = jnp.dot(x.astype(dtype), w1.astype(dtype), preferred_element_type=jnp.float32)
    h = jnp.maximum(h + b1.astype(jnp.float32), 0.0)
    y = jnp.dot(h.astype(dtype), w2.astype(dtype), preferred_element_type=jnp.float32)
    return (y + b2.astype(jnp.float32)).astype(x.dtype)


def _make_params(key, d_model, d_ff):
    kw1, kb1, kw2, kb2 = jax.random.split(key, 4)
    bound1 = 1.0 / np.sqrt(d_model)
    bound2 = 1.0 / np.sqrt(d_ff)
    # Stored pre-transposed: (in_features, out_features)
    w1 = jax.random.uniform(kw1, (d_model, d_ff), jnp.float32, -bound1, bound1)
    b1 = jax.random.uniform(kb1, (d_ff,), jnp.float32, -bound1, bound1)
    w2 = jax.random.uniform(kw2, (d_ff, d_model), jnp.float32, -bound2, bound2)
    b2 = jax.random.uniform(kb2, (d_model,), jnp.float32, -bound2, bound2)
    return w1, b1, w2, b2


if __name__ == "__main__":
    key = jax.random.PRNGKey(0)
    k0, k1, kx1, kx2 = jax.random.split(key, 4)

    # --- small shapes implied by the module: (batch, seq, d_model), d_ff ---
    batch, seq, d_model, d_ff = 2, 8, 32, 64
    x = jax.random.normal(kx1, (batch, seq, d_model), dtype=jnp.float32)
    w1, b1, w2, b2 = _make_params(k0, d_model, d_ff)
    ref = _ref_ffn(x, w1, b1, w2, b2)

    # 1) f32 MXU operands (exact semantics check), weight-resident path, n_k=1.
    out = jax.block_until_ready(
        position_wise_ffn(x, w1, b1, w2, b2, compute_dtype=jnp.float32))
    np.testing.assert_allclose(np.asarray(out), np.asarray(ref), rtol=1e-5, atol=1e-5)

    # 2) default path: bf16 MXU operands + f32 accumulate (documented tolerance
    #    vs the all-f32 reference; tight vs a cast-matched reference).
    out_bf = jax.block_until_ready(position_wise_ffn(x, w1, b1, w2, b2))
    ref_bf = _ref_ffn_cast(x, w1, b1, w2, b2, jnp.bfloat16)
    np.testing.assert_allclose(np.asarray(out_bf), np.asarray(ref_bf), rtol=1e-3, atol=1e-3)
    np.testing.assert_allclose(np.asarray(out_bf), np.asarray(ref), rtol=5e-2, atol=5e-2)

    # 3) row padding + in-kernel d_ff-sliced accumulation (resident path, n_k=2).
    b2_, s2_, dm2, dff2 = 3, 100, 128, 320          # M=300 -> 2 row tiles of 256
    x2 = jax.random.normal(kx2, (b2_, s2_, dm2), dtype=jnp.float32)
    w1b, b1b, w2b, b2b = _make_params(k1, dm2, dff2)
    ref2 = _ref_ffn(x2, w1b, b1b, w2b, b2b)
    ref2_bf = _ref_ffn_cast(x2, w1b, b1b, w2b, b2b, jnp.bfloat16)

    out2 = jax.block_until_ready(
        position_wise_ffn(x2, w1b, b1b, w2b, b2b, tk_ff=256))
    np.testing.assert_allclose(np.asarray(out2), np.asarray(ref2_bf), rtol=1e-3, atol=1e-3)
    np.testing.assert_allclose(np.asarray(out2), np.asarray(ref2), rtol=5e-2, atol=5e-2)

    # 4) streaming fallback kernel (forced), f32 operands, 2x2 grid.
    out3 = jax.block_until_ready(
        position_wise_ffn(x2, w1b, b1b, w2b, b2b, tk_ff=256,
                          compute_dtype=jnp.float32, force_streaming=True))
    np.testing.assert_allclose(np.asarray(out3), np.asarray(ref2), rtol=1e-4, atol=1e-4)

    print("KERNEL_OK")
</pallas_src>

<mosaic_0001>
module attributes {stable_mosaic.version = 11 : i64} {
  func.func @kernel(%arg0: i32, %arg1: memref<128x32xf32, #tpu.memory_space<vmem>>, %arg2: memref<32x64xf32, #tpu.memory_space<vmem>>, %arg3: memref<1x64xf32, #tpu.memory_space<vmem>>, %arg4: memref<64x32xf32, #tpu.memory_space<vmem>>, %arg5: memref<1x32xf32, #tpu.memory_space<vmem>>, %arg6: memref<128x32xf32, #tpu.memory_space<vmem>>, %arg7: memref<128x32xf32, #tpu.memory_space<vmem>>) attributes {dimension_semantics = [#tpu.dimension_semantics<parallel>], iteration_bounds = array<i64: 1>, scalar_prefetch = 0 : i64, scratch_operands = 1 : i64, tpu.core_type = #tpu.core_type<tc>, window_params = [{transform_indices = @transform_0, window_bounds = array<i64: 128, 32>}, {pipeline_mode = #tpu.pipeline_mode<synchronous>, transform_indices = @transform_1, window_bounds = array<i64: 32, 64>}, {pipeline_mode = #tpu.pipeline_mode<synchronous>, transform_indices = @transform_2, window_bounds = array<i64: 1, 64>}, {pipeline_mode = #tpu.pipeline_mode<synchronous>, transform_indices = @transform_3, window_bounds = array<i64: 64, 32>}, {pipeline_mode = #tpu.pipeline_mode<synchronous>, transform_indices = @transform_4, window_bounds = array<i64: 1, 32>}, {transform_indices = @transform_5, window_bounds = array<i64: 128, 32>}]} {
    %c0 = arith.constant 0 : index
    %c0_0 = arith.constant 0 : index
    %0 = vector.load %arg1[%c0, %c0_0] : memref<128x32xf32, #tpu.memory_space<vmem>>, vector<128x32xf32>
    %c0_1 = arith.constant 0 : index
    %c0_2 = arith.constant 0 : index
    %1 = vector.load %arg5[%c0_1, %c0_2] : memref<1x32xf32, #tpu.memory_space<vmem>>, vector<1x32xf32>
    %c0_3 = arith.constant 0 : index
    %c0_4 = arith.constant 0 : index
    %2 = vector.load %arg2[%c0_3, %c0_4] : memref<32x64xf32, #tpu.memory_space<vmem>>, vector<32x64xf32>
    %cst = arith.constant dense<0.000000e+00> : vector<128x64xf32>
    %3 = tpu.matmul %0, %2, %cst {dimension_numbers = #tpu.dot_dimension_numbers<[1], [0], [0], [1], [0, 0, 1, 1], [], []>} : vector<128x32xf32>, vector<32x64xf32>, vector<128x64xf32> -> vector<128x64xf32>
    %c0_5 = arith.constant 0 : index
    %c0_6 = arith.constant 0 : index
    %4 = vector.load %arg3[%c0_5, %c0_6] : memref<1x64xf32, #tpu.memory_space<vmem>>, vector<1x64xf32>
    %5 = vector.broadcast %4 : vector<1x64xf32> to vector<128x64xf32>
    %6 = arith.addf %3, %5 : vector<128x64xf32>
    %cst_7 = arith.constant 0.000000e+00 : f32
    %7 = vector.broadcast %cst_7 : f32 to vector<128x64xf32>
    %8 = arith.maximumf %6, %7 : vector<128x64xf32>
    %c0_8 = arith.constant 0 : index
    %c0_9 = arith.constant 0 : index
    %9 = vector.load %arg4[%c0_8, %c0_9] : memref<64x32xf32, #tpu.memory_space<vmem>>, vector<64x32xf32>
    %cst_10 = arith.constant dense<0.000000e+00> : vector<128x32xf32>
    %10 = tpu.matmul %8, %9, %cst_10 {dimension_numbers = #tpu.dot_dimension_numbers<[1], [0], [0], [1], [0, 0, 1, 1], [], []>} : vector<128x64xf32>, vector<64x32xf32>, vector<128x32xf32> -> vector<128x32xf32>
    %11 = vector.broadcast %1 : vector<1x32xf32> to vector<128x32xf32>
    %12 = arith.addf %10, %11 : vector<128x32xf32>
    %c0_11 = arith.constant 0 : index
    %c0_12 = arith.constant 0 : index
    %13 = vector.load %arg6[%c0_11, %c0_12] : memref<128x32xf32, #tpu.memory_space<vmem>>, vector<128x32xf32>
    tpu.vector_store %arg6[%c0_11, %c0_12], %12 {strides = array<i32>} : memref<128x32xf32, #tpu.memory_space<vmem>>, vector<128x32xf32>,
    return
  }
  func.func @transform_0(%arg0: i32) -> (i32, i32) {
    %c0_i32 = arith.constant 0 : i32
    %c0_i32_0 = arith.constant 0 : i32
    return %arg0, %c0_i32 : i32, i32
  }
  func.func @transform_1(%arg0: i32) -> (i32, i32) {
    %c0_i32 = arith.constant 0 : i32
    %c0_i32_0 = arith.constant 0 : i32
    %c0_i32_1 = arith.constant 0 : i32
    return %c0_i32, %c0_i32_0 : i32, i32
  }
  func.func @transform_2(%arg0: i32) -> (i32, i32) {
    %c0_i32 = arith.constant 0 : i32
    %c0_i32_0 = arith.constant 0 : i32
    %c0_i32_1 = arith.constant 0 : i32
    return %c0_i32, %c0_i32_0 : i32, i32
  }
  func.func @transform_3(%arg0: i32) -> (i32, i32) {
    %c0_i32 = arith.constant 0 : i32
    %c0_i32_0 = arith.constant 0 : i32
    %c0_i32_1 = arith.constant 0 : i32
    return %c0_i32, %c0_i32_0 : i32, i32
  }
  func.func @transform_4(%arg0: i32) -> (i32, i32) {
    %c0_i32 = arith.constant 0 : i32
    %c0_i32_0 = arith.constant 0 : i32
    %c0_i32_1 = arith.constant 0 : i32
    return %c0_i32, %c0_i32_0 : i32, i32
  }
  func.func @transform_5(%arg0: i32) -> (i32, i32) {
    %c0_i32 = arith.constant 0 : i32
    %c0_i32_0 = arith.constant 0 : i32
    return %arg0, %c0_i32 : i32, i32
  }
}

</mosaic_0001>

<llo_original>
// kernel: tpu_custom_call.1
$region0: #{tpu_custom_call.1}
  #allocation0 [shape = 'u32[]', space=smem, size = 0x4, offset = 0x4, fixed_abs, tag = 'smem constant byte address 0x4 - core index']
  #allocation1 [shape = 'u32[72,128]{1,0:T(1,128)}', space=vmem, size = 0x9000, scoped, tag = 'internal scratch']
  #allocation2 [shape = 'f32[128,32]{1,0:T(8,128)}', space=vmem, size = 0x10000, scoped, tag = 'scratch operand']
  %s0 = inlined_call_operand.vmem [shape: f32[128,32], index: 0, kind: input, shape index: {}]
  %s1 = inlined_call_operand.vmem [shape: f32[32,64], index: 1, kind: input, shape index: {}]
  %s2 = inlined_call_operand.vmem [shape: f32[1,64], index: 2, kind: input, shape index: {}]
  %s3 = inlined_call_operand.vmem [shape: f32[64,32], index: 3, kind: input, shape index: {}]
  %s4 = inlined_call_operand.vmem [shape: f32[1,32], index: 4, kind: input, shape index: {}]
  %s5 = inlined_call_operand.vmem [shape: f32[128,32], index: 5, kind: output, shape index: {}]
  %s6 = sld [smem:[#allocation0]]
  $region30: #{tpu_custom_call.1} parent=0
    _
  %s8 = ssub.s32 1, %s6
  %s9 = scalar_select 0, %s8, %s6
  // Predicated region
  $region2: #{tpu_custom_call.1} parent=0 // pred_check
    _
  $region3: #{tpu_custom_call.1} parent=0 // pred_check_branch
    %11 = sbr.rel (0) target = $region5
  $region4: #{tpu_custom_call.1} parent=0 // pred_region
    _
  $region5: #{tpu_custom_call.1} parent=0 // pred_fallthru
    _
  // Predicated region
  $region6: #{tpu_custom_call.1} parent=0 // pred_check
    _
  $region7: #{tpu_custom_call.1} parent=0 // pred_check_branch
    %13 = sbr.rel (0) target = $region9
  $region8: #{tpu_custom_call.1} parent=0 // pred_region
    _
  $region9: #{tpu_custom_call.1} parent=0 // pred_fallthru
    _
  // Predicated region
  $region10: #{tpu_custom_call.1} parent=0 // pred_check
    _
  $region11: #{tpu_custom_call.1} parent=0 // pred_check_branch
    %15 = sbr.rel (0) target = $region13
  $region12: #{tpu_custom_call.1} parent=0 // pred_region
    _
  $region13: #{tpu_custom_call.1} parent=0 // pred_fallthru
    _
  // Predicated region
  $region14: #{tpu_custom_call.1} parent=0 // pred_check
    _
  $region15: #{tpu_custom_call.1} parent=0 // pred_check_branch
    %17 = sbr.rel (0) target = $region17
  $region16: #{tpu_custom_call.1} parent=0 // pred_region
    _
  $region17: #{tpu_custom_call.1} parent=0 // pred_fallthru
    _
  // Predicated region
  $region18: #{tpu_custom_call.1} parent=0 // pred_check
    _
  $region19: #{tpu_custom_call.1} parent=0 // pred_check_branch
    %19 = sbr.rel (0) target = $region21
  $region20: #{tpu_custom_call.1} parent=0 // pred_region
    _
  $region21: #{tpu_custom_call.1} parent=0 // pred_fallthru
    _
  %v20 = vld [vmem:[%s0] sm:$0xff]
  %v21 = vld [vmem:[%s0 + $0x8] sm:$0xff]
  %v22 = vld [vmem:[%s0 + $0x10] sm:$0xff]
  %v23 = vld [vmem:[%s0 + $0x18] sm:$0xff]
  %v24 = vld [vmem:[%s0 + $0x20] sm:$0xff]
  %v25 = vld [vmem:[%s0 + $0x28] sm:$0xff]
  %v26 = vld [vmem:[%s0 + $0x30] sm:$0xff]
  %v27 = vld [vmem:[%s0 + $0x38] sm:$0xff]
  %v28 = vld [vmem:[%s0 + $0x40] sm:$0xff]
  %v29 = vld [vmem:[%s0 + $0x48] sm:$0xff]
  %v30 = vld [vmem:[%s0 + $0x50] sm:$0xff]
  %v31 = vld [vmem:[%s0 + $0x58] sm:$0xff]
  %v32 = vld [vmem:[%s0 + $0x60] sm:$0xff]
  %v33 = vld [vmem:[%s0 + $0x68] sm:$0xff]
  %v34 = vld [vmem:[%s0 + $0x70] sm:$0xff]
  %v35 = vld [vmem:[%s0 + $0x78] sm:$0xff]
  %v36 = vld [vmem:[%s4] sm:$0x1]
  %v37 = vld [vmem:[%s1] sm:$0xff]
  %v38 = vld [vmem:[%s1 + $0x8] sm:$0xff]
  %v39 = vld [vmem:[%s1 + $0x10] sm:$0xff]
  %v40 = vld [vmem:[%s1 + $0x18] sm:$0xff]
  %v41 = vld [vmem:[%s2] sm:$0x1]
  %v43 = vperm.slane %v41, 0
  %vm45 = vcmask 261120
  %v47 = vsel %vm45, %v20, 0
  %v50 = vsel %vm45, %v21, 0
  %v53 = vsel %vm45, %v22, 0
  %v56 = vsel %vm45, %v23, 0
  %v59 = vsel %vm45, %v24, 0
  %v62 = vsel %vm45, %v25, 0
  %v65 = vsel %vm45, %v26, 0
  %v68 = vsel %vm45, %v27, 0
  %v71 = vsel %vm45, %v28, 0
  %v74 = vsel %vm45, %v29, 0
  %v77 = vsel %vm45, %v30, 0
  %v80 = vsel %vm45, %v31, 0
  %v83 = vsel %vm45, %v32, 0
  %v86 = vsel %vm45, %v33, 0
  %v89 = vsel %vm45, %v34, 0
  %v92 = vsel %vm45, %v35, 0
  %94 = vmatpush.msra.mxu0 0.0
  %95 = vmatpush.msra.mxu0 0.0
  %96 = vmatpush.msra.mxu0 0.0
  %97 = vmatpush.msra.mxu0 0.0
  %98 = vmatpush.msra.mxu0 0.0
  %99 = vmatpush.msra.mxu0 0.0
  %100 = vmatpush.msra.mxu0 0.0
  %101 = vmatpush.msra.mxu0 0.0
  %102 = vmatpush.msra.mxu0 0.0
  %103 = vmatpush.msra.mxu0 0.0
  %104 = vmatpush.msra.mxu0 0.0
  %105 = vmatpush.msra.mxu0 0.0
  %106 = vmatpush.msra.mxu0 %v40
  %107 = vmatpush.msra.mxu0 %v39
  %108 = vmatpush.msra.mxu0 %v38
  %109 = vmatpush.msra.mxu0 %v37
  %110 = vmatmul.f32.gmra.mxu0 %v47
  %v111 = vpop.f32.mrf.mxu0
  %v112 = vadd.f32 %v43, %v111
  %113 = vmatmul.f32.gmra.mxu0 %v50
  %v114 = vpop.f32.mrf.mxu0
  %v115 = vadd.f32 %v43, %v114
  %116 = vmatmul.f32.gmra.mxu0 %v53
  %v117 = vpop.f32.mrf.mxu0
  %v118 = vadd.f32 %v43, %v117
  %119 = vmatmul.f32.gmra.mxu0 %v56
  %v120 = vpop.f32.mrf.mxu0
  %v121 = vadd.f32 %v43, %v120
  %122 = vmatmul.f32.gmra.mxu0 %v59
  %v123 = vpop.f32.mrf.mxu0
  %v124 = vadd.f32 %v43, %v123
  %125 = vmatmul.f32.gmra.mxu0 %v62
  %v126 = vpop.f32.mrf.mxu0
  %v127 = vadd.f32 %v43, %v126
  %128 = vmatmul.f32.gmra.mxu0 %v65
  %v129 = vpop.f32.mrf.mxu0
  %v130 = vadd.f32 %v43, %v129
  %131 = vmatmul.f32.gmra.mxu0 %v68
  %v132 = vpop.f32.mrf.mxu0
  %v133 = vadd.f32 %v43, %v132
  %134 = vmatmul.f32.gmra.mxu0 %v71
  %v135 = vpop.f32.mrf.mxu0
  %v136 = vadd.f32 %v43, %v135
  %137 = vmatmul.f32.gmra.mxu0 %v74
  %v138 = vpop.f32.mrf.mxu0
  %v139 = vadd.f32 %v43, %v138
  %140 = vmatmul.f32.gmra.mxu0 %v77
  %v141 = vpop.f32.mrf.mxu0
  %v142 = vadd.f32 %v43, %v141
  %143 = vmatmul.f32.gmra.mxu0 %v80
  %v144 = vpop.f32.mrf.mxu0
  %v145 = vadd.f32 %v43, %v144
  %146 = vmatmul.f32.gmra.mxu0 %v83
  %v147 = vpop.f32.mrf.mxu0
  %v148 = vadd.f32 %v43, %v147
  %149 = vmatmul.f32.gmra.mxu0 %v86
  %v150 = vpop.f32.mrf.mxu0
  %v151 = vadd.f32 %v43, %v150
  %152 = vmatmul.f32.gmra.mxu0 %v89
  %v153 = vpop.f32.mrf.mxu0
  %v154 = vadd.f32 %v43, %v153
  %155 = vmatmul.f32.gmra.mxu0 %v92
  %v156 = vpop.f32.mrf.mxu0
  %v157 = vadd.f32 %v43, %v156
  %158 = vdwg.mxu0
  %v159 = vmax.f32 %v112, 0.0
  %v160 = vmax.f32 %v115, 0.0
  %v161 = vmax.f32 %v118, 0.0
  %v162 = vmax.f32 %v121, 0.0
  %v163 = vmax.f32 %v124, 0.0
  %v164 = vmax.f32 %v127, 0.0
  %v165 = vmax.f32 %v130, 0.0
  %v166 = vmax.f32 %v133, 0.0
  %v167 = vmax.f32 %v136, 0.0
  %v168 = vmax.f32 %v139, 0.0
  %v169 = vmax.f32 %v142, 0.0
  %v170 = vmax.f32 %v145, 0.0
  %v171 = vmax.f32 %v148, 0.0
  %v172 = vmax.f32 %v151, 0.0
  %v173 = vmax.f32 %v154, 0.0
  %v174 = vmax.f32 %v157, 0.0
  %v175 = vld [vmem:[%s3] sm:$0xff]
  %v176 = vld [vmem:[%s3 + $0x8] sm:$0xff]
  %v177 = vld [vmem:[%s3 + $0x10] sm:$0xff]
  %v178 = vld [vmem:[%s3 + $0x18] sm:$0xff]
  %v179 = vld [vmem:[%s3 + $0x20] sm:$0xff]
  %v180 = vld [vmem:[%s3 + $0x28] sm:$0xff]
  %v181 = vld [vmem:[%s3 + $0x30] sm:$0xff]
  %v182 = vld [vmem:[%s3 + $0x38] sm:$0xff]
  %v184 = vperm.slane %v36, 0
  %vm186 = vcmask 523264
  %v188 = vsel %vm186, %v159, 0
  %v191 = vsel %vm186, %v160, 0
  %v194 = vsel %vm186, %v161, 0
  %v197 = vsel %vm186, %v162, 0
  %v200 = vsel %vm186, %v163, 0
  %v203 = vsel %vm186, %v164, 0
  %v206 = vsel %vm186, %v165, 0
  %v209 = vsel %vm186, %v166, 0
  %v212 = vsel %vm186, %v167, 0
  %v215 = vsel %vm186, %v168, 0
  %v218 = vsel %vm186, %v169, 0
  %v221 = vsel %vm186, %v170, 0
  %v224 = vsel %vm186, %v171, 0
  %v227 = vsel %vm186, %v172, 0
  %v230 = vsel %vm186, %v173, 0
  %v233 = vsel %vm186, %v174, 0
  %235 = vmatpush.msra.mxu0 0.0
  %236 = vmatpush.msra.mxu0 0.0
  %237 = vmatpush.msra.mxu0 0.0
  %238 = vmatpush.msra.mxu0 0.0
  %239 = vmatpush.msra.mxu0 0.0
  %240 = vmatpush.msra.mxu0 0.0
  %241 = vmatpush.msra.mxu0 0.0
  %242 = vmatpush.msra.mxu0 0.0
  %243 = vmatpush.msra.mxu0 %v182
  %244 = vmatpush.msra.mxu0 %v181
  %245 = vmatpush.msra.mxu0 %v180
  %246 = vmatpush.msra.mxu0 %v179
  %247 = vmatpush.msra.mxu0 %v178
  %248 = vmatpush.msra.mxu0 %v177
  %249 = vmatpush.msra.mxu0 %v176
  %250 = vmatpush.msra.mxu0 %v175
  %251 = vmatmul.f32.gmra.mxu0 %v188
  %v252 = vpop.f32.mrf.mxu0
  %v253 = vadd.f32 %v184, %v252
  %254 = vmatmul.f32.gmra.mxu0 %v191
  %v255 = vpop.f32.mrf.mxu0
  %v256 = vadd.f32 %v184, %v255
  %257 = vmatmul.f32.gmra.mxu0 %v194
  %v258 = vpop.f32.mrf.mxu0
  %v259 = vadd.f32 %v184, %v258
  %260 = vmatmul.f32.gmra.mxu0 %v197
  %v261 = vpop.f32.mrf.mxu0
  %v262 = vadd.f32 %v184, %v261
  %263 = vmatmul.f32.gmra.mxu0 %v200
  %v264 = vpop.f32.mrf.mxu0
  %v265 = vadd.f32 %v184, %v264
  %266 = vmatmul.f32.gmra.mxu0 %v203
  %v267 = vpop.f32.mrf.mxu0
  %v268 = vadd.f32 %v184, %v267
  %269 = vmatmul.f32.gmra.mxu0 %v206
  %v270 = vpop.f32.mrf.mxu0
  %v271 = vadd.f32 %v184, %v270
  %272 = vmatmul.f32.gmra.mxu0 %v209
  %v273 = vpop.f32.mrf.mxu0
  %v274 = vadd.f32 %v184, %v273
  %275 = vmatmul.f32.gmra.mxu0 %v212
  %v276 = vpop.f32.mrf.mxu0
  %v277 = vadd.f32 %v184, %v276
  %278 = vmatmul.f32.gmra.mxu0 %v215
  %v279 = vpop.f32.mrf.mxu0
  %v280 = vadd.f32 %v184, %v279
  %281 = vmatmul.f32.gmra.mxu0 %v218
  %v282 = vpop.f32.mrf.mxu0
  %v283 = vadd.f32 %v184, %v282
  %284 = vmatmul.f32.gmra.mxu0 %v221
  %v285 = vpop.f32.mrf.mxu0
  %v286 = vadd.f32 %v184, %v285
  %287 = vmatmul.f32.gmra.mxu0 %v224
  %v288 = vpop.f32.mrf.mxu0
  %v289 = vadd.f32 %v184, %v288
  %290 = vmatmul.f32.gmra.mxu0 %v227
  %v291 = vpop.f32.mrf.mxu0
  %v292 = vadd.f32 %v184, %v291
  %293 = vmatmul.f32.gmra.mxu0 %v230
  %v294 = vpop.f32.mrf.mxu0
  %v295 = vadd.f32 %v184, %v294
  %296 = vmatmul.f32.gmra.mxu0 %v233
  %v297 = vpop.f32.mrf.mxu0
  %v298 = vadd.f32 %v184, %v297
  %299 = vdwg.mxu0
  %300 = vst.msk [vmem:[%s5] sm:$0xff] %vm45, %v253
  %301 = vst.msk [vmem:[%s5 + $0x8] sm:$0xff] %vm45, %v256
  %302 = vst.msk [vmem:[%s5 + $0x10] sm:$0xff] %vm45, %v259
  %303 = vst.msk [vmem:[%s5 + $0x18] sm:$0xff] %vm45, %v262
  %304 = vst.msk [vmem:[%s5 + $0x20] sm:$0xff] %vm45, %v265
  %305 = vst.msk [vmem:[%s5 + $0x28] sm:$0xff] %vm45, %v268
  %306 = vst.msk [vmem:[%s5 + $0x30] sm:$0xff] %vm45, %v271
  %307 = vst.msk [vmem:[%s5 + $0x38] sm:$0xff] %vm45, %v274
  %308 = vst.msk [vmem:[%s5 + $0x40] sm:$0xff] %vm45, %v277
  %309 = vst.msk [vmem:[%s5 + $0x48] sm:$0xff] %vm45, %v280
  %310 = vst.msk [vmem:[%s5 + $0x50] sm:$0xff] %vm45, %v283
  %311 = vst.msk [vmem:[%s5 + $0x58] sm:$0xff] %vm45, %v286
  %312 = vst.msk [vmem:[%s5 + $0x60] sm:$0xff] %vm45, %v289
  %313 = vst.msk [vmem:[%s5 + $0x68] sm:$0xff] %vm45, %v292
  %314 = vst.msk [vmem:[%s5 + $0x70] sm:$0xff] %vm45, %v295
  %315 = vst.msk [vmem:[%s5 + $0x78] sm:$0xff] %vm45, %v298
  // Predicated region
  $region22: #{tpu_custom_call.1} parent=0 // pred_check
    _
  $region23: #{tpu_custom_call.1} parent=0 // pred_check_branch
    %317 = sbr.rel (0) target = $region25
  $region24: #{tpu_custom_call.1} parent=0 // pred_region
    _
  $region25: #{tpu_custom_call.1} parent=0 // pred_fallthru
    _
  // Predicated region
  $region26: #{tpu_custom_call.1} parent=0 // pred_check
    _
  $region27: #{tpu_custom_call.1} parent=0 // pred_check_branch
    %319 = sbr.rel (0) target = $region29
  $region28: #{tpu_custom_call.1} parent=0 // pred_region
    _
  $region29: #{tpu_custom_call.1} parent=0 // pred_fallthru
    _

</llo_original>
